<compile_context>
chip_gen: v6e
topology: v6e:2x2x1
jax: 0.10.0
libtpu: 0.0.40
codegen_flags: <defaults>
</compile_context>

<pallas_src>
import functools

import jax
import jax.numpy as jnp
from jax import lax
from jax.experimental import pallas as pl
from jax.experimental.pallas import tpu as pltpu

_EPS = 1e-5
_VMEM_LIMIT = 32 * 1024 * 1024  # safe on v5e (raises 16MiB default) / v6e / v7x


def _round_up(x, m):
    return -(-x // m) * m


# ---------------------------------------------------------------------------
# Fused tiled matmul + per-channel BN statistics (sum, sum of squares)
# ---------------------------------------------------------------------------
def _mm_stats_kernel(x_ref, w_ref, o_ref, stats_ref, acc_ref):
    k = pl.program_id(2)

    @pl.when(k == 0)
    def _init():
        acc_ref[...] = jnp.zeros_like(acc_ref)

    acc_ref[...] += jnp.dot(
        x_ref[...], w_ref[...], preferred_element_type=jnp.float32
    )

    @pl.when(k == pl.num_programs(2) - 1)
    def _finalize():
        acc = acc_ref[...]
        o_ref[...] = acc.astype(o_ref.dtype)
        s = jnp.sum(acc, axis=0, keepdims=True)          # (1, tn) channel sums
        ss = jnp.sum(acc * acc, axis=0, keepdims=True)   # (1, tn) channel sumsq
        row = lax.broadcasted_iota(jnp.int32, (8, acc.shape[1]), 0)
        stats_ref[...] = jnp.where(row == 0, s, 0.0) + jnp.where(row == 1, ss, 0.0)


def fused_matmul(x_bf16, w_bf16, *, out_dtype=jnp.float32):
    """x:[M,K] bf16 @ w:[K,N] bf16 -> (out [Mp,N] f32, col_sum [N], col_sumsq [N]).

    Rows of `out` beyond M are zero-padded inputs (and contribute nothing to
    the statistics); the caller slices them off.
    """
    M, K = x_bf16.shape
    K2, N = w_bf16.shape
    assert K == K2

    tm = min(256, _round_up(M, 16))
    tk = min(512, _round_up(K, 128))
    if N < 128:
        Np, tn = N, N                     # full-dim block (e.g. C=64 stages)
    else:
        Np = _round_up(N, 128)
        tn = 256 if Np % 256 == 0 else 128
    Mp = _round_up(M, tm)
    Kp = _round_up(K, tk)

    if (Mp, Kp) != (M, K):
        x_bf16 = jnp.pad(x_bf16, ((0, Mp - M), (0, Kp - K)))
    if (Kp, Np) != (K, N):
        w_bf16 = jnp.pad(w_bf16, ((0, Kp - K), (0, Np - N)))

    gm, gn, gk = Mp // tm, Np // tn, Kp // tk

    out, stats = pl.pallas_call(
        _mm_stats_kernel,
        grid=(gm, gn, gk),
        in_specs=[
            pl.BlockSpec((tm, tk), lambda i, j, k: (i, k)),
            pl.BlockSpec((tk, tn), lambda i, j, k: (k, j)),
        ],
        out_specs=(
            pl.BlockSpec((tm, tn), lambda i, j, k: (i, j)),
            pl.BlockSpec((8, tn), lambda i, j, k: (i, j)),
        ),
        out_shape=(
            jax.ShapeDtypeStruct((Mp, Np), out_dtype),
            jax.ShapeDtypeStruct((gm * 8, Np), jnp.float32),
        ),
        scratch_shapes=[pltpu.VMEM((tm, tn), jnp.float32)],
        compiler_params=pltpu.CompilerParams(
            dimension_semantics=("parallel", "parallel", "arbitrary"),
            vmem_limit_bytes=_VMEM_LIMIT,
        ),
        cost_estimate=pl.CostEstimate(
            flops=2 * Mp * Kp * Np,
            transcendentals=0,
            bytes_accessed=Mp * Kp * 2 + Kp * Np * 2 + Mp * Np * 4 + gm * 8 * Np * 4,
        ),
    )(x_bf16, w_bf16)

    stats = stats.reshape(gm, 8, Np)
    sums = stats[:, 0, :N].sum(axis=0)
    sumsq = stats[:, 1, :N].sum(axis=0)
    if Np != N:
        out = out[:, :N]
    return out, sums, sumsq


# ---------------------------------------------------------------------------
# Fused BN normalize + affine (+ residual / residual-BN) + ReLU epilogue
# ---------------------------------------------------------------------------
def bn_affine(sums, sumsq, count, gamma, beta):
    """Per-channel scale/shift from batch statistics (PyTorch training-mode BN)."""
    inv = 1.0 / float(count)
    mean = sums * inv
    var = jnp.maximum(sumsq * inv - mean * mean, 0.0)   # biased variance
    scale = gamma * lax.rsqrt(var + _EPS)
    shift = beta - mean * scale
    return scale, shift


def _bn_epilogue_kernel(*refs, relu, res_mode):
    if res_mode == 0:
        y_ref, s_ref, b_ref, o_ref = refs
    elif res_mode == 1:
        y_ref, s_ref, b_ref, r_ref, o_ref = refs
    else:
        y_ref, s_ref, b_ref, r_ref, rs_ref, rb_ref, o_ref = refs

    y = y_ref[...].astype(jnp.float32) * s_ref[...] + b_ref[...]
    if res_mode == 1:                       # pre-activated identity residual
        y = y + r_ref[...].astype(jnp.float32)
    elif res_mode == 2:                     # raw downsample conv + its own BN
        y = y + (r_ref[...].astype(jnp.float32) * rs_ref[...] + rb_ref[...])
    if relu:
        y = jnp.maximum(y, 0.0)
    o_ref[...] = y.astype(o_ref.dtype)


def bn_epilogue(y, scale, shift, *, relu, residual=None, res_affine=None,
                out_dtype=jnp.bfloat16):
    """y:[Mp,C] conv output -> bn(+res)(+relu) activations [Mp,C] (bf16)."""
    Mp, C = y.shape

    # Lane-fold narrow channel dims (C=64) so every store is 128-lane dense.
    f = 128 // C if (C < 128 and 128 % C == 0 and (Mp * C) % 128 == 0) else 1
    Cf, Mf = C * f, Mp // f

    def fold(a):
        return a.reshape(Mf, Cf)

    def fold_param(p):
        p = p.reshape(1, C).astype(jnp.float32)
        return jnp.tile(p, (1, f)) if f > 1 else p

    args = [fold(y), fold_param(scale), fold_param(shift)]
    res_mode = 0
    if residual is not None:
        args.append(fold(residual))
        if res_affine is None:
            res_mode = 1
        else:
            res_mode = 2
            args.append(fold_param(res_affine[0]))
            args.append(fold_param(res_affine[1]))

    tm = min(1024, Mf)
    Mfp = _round_up(Mf, tm)
    if Mfp != Mf:
        args = [jnp.pad(a, ((0, Mfp - a.shape[0]), (0, 0)))
                if a.shape[0] == Mf else a for a in args]

    def spec(a):
        if a.shape[0] == 1:
            return pl.BlockSpec((1, Cf), lambda i: (0, 0))
        return pl.BlockSpec((tm, Cf), lambda i: (i, 0))

    out = pl.pallas_call(
        functools.partial(_bn_epilogue_kernel, relu=relu, res_mode=res_mode),
        grid=(Mfp // tm,),
        in_specs=[spec(a) for a in args],
        out_specs=pl.BlockSpec((tm, Cf), lambda i: (i, 0)),
        out_shape=jax.ShapeDtypeStruct((Mfp, Cf), out_dtype),
        compiler_params=pltpu.CompilerParams(
            dimension_semantics=("parallel",),
            vmem_limit_bytes=_VMEM_LIMIT,
        ),
    )(*args)

    if Mfp != Mf:
        out = out[:Mf]
    return out.reshape(Mp, C)


# ---------------------------------------------------------------------------
# Conv via im2col (slicing is glue, matmul+stats is Pallas)
# ---------------------------------------------------------------------------
def _im2col(x, kh, kw, stride, pad):
    N, H, W, C = x.shape
    xp = jnp.pad(x, ((0, 0), (pad, pad), (pad, pad), (0, 0))) if pad else x
    OH = (H + 2 * pad - kh) // stride + 1
    OW = (W + 2 * pad - kw) // stride + 1
    cols = []
    for i in range(kh):
        for j in range(kw):
            cols.append(
                xp[:, i:i + (OH - 1) * stride + 1:stride,
                      j:j + (OW - 1) * stride + 1:stride, :]
            )
    cols = jnp.concatenate(cols, axis=-1)        # [N, OH, OW, kh*kw*C]
    return cols.reshape(N * OH * OW, kh * kw * C), OH, OW


def conv2d(x_nhwc, w_hwio, stride, pad):
    # TODO(synk): replace the HBM im2col with per-tap accumulation inside the
    # matmul kernel (kh*kw as a reduction grid axis with shifted/strided window
    # DMAs) to remove the 9x/49x activation duplication in HBM traffic.
    kh, kw, cin, cout = w_hwio.shape
    cols, OH, OW = _im2col(x_nhwc.astype(jnp.bfloat16), kh, kw, stride, pad)
    w2d = w_hwio.reshape(kh * kw * cin, cout).astype(jnp.bfloat16)
    out, sums, sumsq = fused_matmul(cols, w2d)
    return out, sums, sumsq, cols.shape[0], OH, OW


def _match_rows(a, rows):
    if a.shape[0] == rows:
        return a
    if a.shape[0] > rows:
        return a[:rows]
    return jnp.pad(a, ((0, rows - a.shape[0]), (0, 0)))


# ---------------------------------------------------------------------------
# ResNet-18 (fc replaced by Identity, as in the encoders)
# ---------------------------------------------------------------------------
def basic_block(x, p):
    N, H, W, Cin = x.shape
    stride = p["stride"]
    cout = p["conv1"].shape[-1]

    y1, s1, q1, M1, OH, OW = conv2d(x, p["conv1"], stride, 1)
    sc1, sh1 = bn_affine(s1, q1, M1, p["bn1_g"], p["bn1_b"])
    a1 = bn_epilogue(y1, sc1, sh1, relu=True)[:M1].reshape(N, OH, OW, cout)

    y2, s2, q2, M2, _, _ = conv2d(a1, p["conv2"], 1, 1)
    sc2, sh2 = bn_affine(s2, q2, M2, p["bn2_g"], p["bn2_b"])
    Mp2 = y2.shape[0]

    if "down_conv" in p:
        yd, sd, qd, Md, _, _ = conv2d(x, p["down_conv"], stride, 0)
        scd, shd = bn_affine(sd, qd, Md, p["down_bn_g"], p["down_bn_b"])
        out = bn_epilogue(y2, sc2, sh2, relu=True,
                          residual=_match_rows(yd, Mp2),
                          res_affine=(scd, shd))
    else:
        idr = _match_rows(x.reshape(N * H * W, Cin), Mp2)
        out = bn_epilogue(y2, sc2, sh2, relu=True, residual=idr)
    return out[:M2].reshape(N, OH, OW, cout)


def _max_pool_3x3_s2_p1(x):
    return lax.reduce_window(
        x, jnp.array(-jnp.inf, x.dtype), lax.max,
        (1, 3, 3, 1), (1, 2, 2, 1), ((0, 0), (1, 1), (1, 1), (0, 0)),
    )


def resnet18_forward(x_nhwc, p):
    N = x_nhwc.shape[0]
    cout = p["conv1"].shape[-1]
    y, s, q, M, OH, OW = conv2d(x_nhwc, p["conv1"], 2, 3)   # 7x7 / s2 / p3
    sc, sh = bn_affine(s, q, M, p["bn1_g"], p["bn1_b"])
    x = bn_epilogue(y, sc, sh, relu=True)[:M].reshape(N, OH, OW, cout)
    x = _max_pool_3x3_s2_p1(x)                               # 3x3 / s2 / p1
    for stage in p["stages"]:
        for blk in stage["blocks"]:
            x = basic_block(x, blk)
    # TODO(synk): fold this global average pool into the last block's epilogue
    # (per-(n,c) resident row-sum) to save one read+write of the last activation.
    return jnp.mean(x.astype(jnp.float32), axis=(1, 2))      # [N, 512]


# ---------------------------------------------------------------------------
# Parameter init (deterministic, synthetic)
# ---------------------------------------------------------------------------
def init_resnet18(key, in_ch):
    keys = iter(jax.random.split(key, 64))

    def conv(kh, kw, ci, co):
        return jax.random.normal(next(keys), (kh, kw, ci, co), jnp.float32) * (
            2.0 / (kh * kw * ci)
        ) ** 0.5

    p = {
        "conv1": conv(7, 7, in_ch, 64),
        "bn1_g": jnp.ones((64,), jnp.float32),
        "bn1_b": jnp.zeros((64,), jnp.float32),
    }
    stages = []
    cin = 64
    for cout, first_stride in ((64, 1), (128, 2), (256, 2), (512, 2)):
        blocks = []
        for bi in range(2):
            s = first_stride if bi == 0 else 1
            blk = {
                "stride": s,
                "conv1": conv(3, 3, cin, cout),
                "bn1_g": jnp.ones((cout,), jnp.float32),
                "bn1_b": jnp.zeros((cout,), jnp.float32),
                "conv2": conv(3, 3, cout, cout),
                "bn2_g": jnp.ones((cout,), jnp.float32),
                "bn2_b": jnp.zeros((cout,), jnp.float32),
            }
            if s != 1 or cin != cout:
                blk["down_conv"] = conv(1, 1, cin, cout)
                blk["down_bn_g"] = jnp.ones((cout,), jnp.float32)
                blk["down_bn_b"] = jnp.zeros((cout,), jnp.float32)
            blocks.append(blk)
            cin = cout
        stages.append({"blocks": blocks})
    p["stages"] = stages
    return p


# ---------------------------------------------------------------------------
# MLAResNet18 forward
# ---------------------------------------------------------------------------
def mla_resnet18_forward(params, x, modality_id: int):
    """modality_id: 0 = image (NCHW float), 1 = text (int token ids [N,1,L])."""
    if modality_id == 0:
        x_nhwc = jnp.transpose(x, (0, 2, 3, 1)).astype(jnp.bfloat16)
        feature_out = resnet18_forward(x_nhwc, params["img"])
    else:
        emb = jnp.take(params["text"]["embedding"], x, axis=0)  # [N,1,L,E]
        x_nhwc = jnp.transpose(emb, (0, 2, 3, 1)).astype(jnp.bfloat16)
        feature_out = resnet18_forward(x_nhwc, params["text"])

    # Head: 512 -> num_classes.  Weight is zero-padded to 128 output columns
    # so the Pallas matmul stores are lane-dense; logits are sliced after.
    n_cls = params["num_classes"]
    out, _, _ = fused_matmul(
        feature_out.astype(jnp.bfloat16), params["head_w"].astype(jnp.bfloat16)
    )
    logits = out[: feature_out.shape[0], :n_cls] + params["head_b"][:n_cls]
    return logits, feature_out


# ---------------------------------------------------------------------------
if __name__ == "__main__":
    num_classes = 10
    vocab_size = 50
    embedding_dim = 16  # small synthetic shapes

    key = jax.random.PRNGKey(0)
    k_img_p, k_txt_p, k_emb, k_hw, k_xi, k_xt = jax.random.split(key, 6)

    head_cols = 128  # lane-dense padded head
    head_w = jnp.zeros((512, head_cols), jnp.float32).at[:, :num_classes].set(
        jax.random.normal(k_hw, (512, num_classes), jnp.float32) * (1.0 / 512.0) ** 0.5
    )

    params = {
        "img": init_resnet18(k_img_p, 3),
        "text": dict(
            init_resnet18(k_txt_p, 1),
            embedding=jax.random.normal(
                k_emb, (vocab_size, embedding_dim), jnp.float32
            ) * 0.02,
        ),
        "head_w": head_w,
        "head_b": jnp.zeros((head_cols,), jnp.float32),
        "num_classes": num_classes,
    }

    # PyTorch-convention inputs
    x_image = jax.random.normal(k_xi, (2, 3, 16, 16), jnp.float32)   # NCHW
    x_text = jax.random.randint(k_xt, (2, 1, 16), 0, vocab_size)     # token ids

    logits_img, feat_img = mla_resnet18_forward(params, x_image, 0)
    logits_txt, feat_txt = mla_resnet18_forward(params, x_text, 1)
    jax.block_until_ready((logits_img, logits_txt, feat_img, feat_txt))

    assert logits_img.shape == (2, num_classes) and feat_img.shape == (2, 512)
    assert logits_txt.shape == (2, num_classes) and feat_txt.shape == (2, 512)
    assert bool(jnp.all(jnp.isfinite(logits_img)))
    assert bool(jnp.all(jnp.isfinite(logits_txt)))
    print("KERNEL_OK")
</pallas_src>

<mosaic_0001>
module attributes {stable_mosaic.version = 11 : i64} {
  func.func @_mm_stats_kernel(%arg0: i32, %arg1: i32, %arg2: i32, %arg3: memref<128x256xbf16, #tpu.memory_space<vmem>>, %arg4: memref<256x64xbf16, #tpu.memory_space<vmem>>, %arg5: memref<128x64xf32, #tpu.memory_space<vmem>>, %arg6: memref<8x64xf32, #tpu.memory_space<vmem>>, %arg7: memref<128x64xf32, #tpu.memory_space<vmem>>) attributes {dimension_semantics = [#tpu.dimension_semantics<parallel>, #tpu.dimension_semantics<parallel>, #tpu.dimension_semantics<arbitrary>], iteration_bounds = array<i64: 1, 1, 1>, scalar_prefetch = 0 : i64, scratch_operands = 1 : i64, tpu.core_type = #tpu.core_type<tc>, window_params = [{transform_indices = @transform_0, window_bounds = array<i64: 128, 256>}, {transform_indices = @transform_1, window_bounds = array<i64: 256, 64>}, {transform_indices = @transform_2, window_bounds = array<i64: 128, 64>}, {transform_indices = @transform_3, window_bounds = array<i64: 8, 64>}]} {
    %c0_i32 = arith.constant 0 : i32
    %0 = arith.cmpi eq, %arg2, %c0_i32 : i32
    %1 = arith.extui %0 : i1 to i32
    %c0_i32_0 = arith.constant 0 : i32
    %2 = arith.cmpi ne, %1, %c0_i32_0 : i32
    scf.if %2 {
      %cst_10 = arith.constant 0.000000e+00 : f32
      %12 = vector.broadcast %cst_10 : f32 to vector<128x64xf32>
      %c0_11 = arith.constant 0 : index
      %c0_12 = arith.constant 0 : index
      %13 = vector.load %arg7[%c0_11, %c0_12] : memref<128x64xf32, #tpu.memory_space<vmem>>, vector<128x64xf32>
      tpu.vector_store %arg7[%c0_11, %c0_12], %12 {strides = array<i32>} : memref<128x64xf32, #tpu.memory_space<vmem>>, vector<128x64xf32>,
    } else {
    }
    %c0 = arith.constant 0 : index
    %c0_1 = arith.constant 0 : index
    %3 = vector.load %arg7[%c0, %c0_1] : memref<128x64xf32, #tpu.memory_space<vmem>>, vector<128x64xf32>
    %c0_2 = arith.constant 0 : index
    %c0_3 = arith.constant 0 : index
    %4 = vector.load %arg3[%c0_2, %c0_3] : memref<128x256xbf16, #tpu.memory_space<vmem>>, vector<128x256xbf16>
    %c0_4 = arith.constant 0 : index
    %c0_5 = arith.constant 0 : index
    %5 = vector.load %arg4[%c0_4, %c0_5] : memref<256x64xbf16, #tpu.memory_space<vmem>>, vector<256x64xbf16>
    %cst = arith.constant dense<0.000000e+00> : vector<128x64xf32>
    %6 = tpu.matmul %4, %5, %cst {dimension_numbers = #tpu.dot_dimension_numbers<[1], [0], [0], [1], [0, 0, 1, 1], [], []>} : vector<128x256xbf16>, vector<256x64xbf16>, vector<128x64xf32> -> vector<128x64xf32>
    %7 = arith.addf %3, %6 : vector<128x64xf32>
    %c0_6 = arith.constant 0 : index
    %c0_7 = arith.constant 0 : index
    %8 = vector.load %arg7[%c0_6, %c0_7] : memref<128x64xf32, #tpu.memory_space<vmem>>, vector<128x64xf32>
    tpu.vector_store %arg7[%c0_6, %c0_7], %7 {strides = array<i32>} : memref<128x64xf32, #tpu.memory_space<vmem>>, vector<128x64xf32>,
    %c0_i32_8 = arith.constant 0 : i32
    %9 = arith.cmpi eq, %arg2, %c0_i32_8 : i32
    %10 = arith.extui %9 : i1 to i32
    %c0_i32_9 = arith.constant 0 : i32
    %11 = arith.cmpi ne, %10, %c0_i32_9 : i32
    scf.if %11 {
      %c0_10 = arith.constant 0 : index
      %c0_11 = arith.constant 0 : index
      %12 = vector.load %arg7[%c0_10, %c0_11] : memref<128x64xf32, #tpu.memory_space<vmem>>, vector<128x64xf32>
      %c0_12 = arith.constant 0 : index
      %c0_13 = arith.constant 0 : index
      %13 = vector.load %arg5[%c0_12, %c0_13] : memref<128x64xf32, #tpu.memory_space<vmem>>, vector<128x64xf32>
      tpu.vector_store %arg5[%c0_12, %c0_13], %12 {strides = array<i32>} : memref<128x64xf32, #tpu.memory_space<vmem>>, vector<128x64xf32>,
      %cst_14 = arith.constant dense<0.000000e+00> : vector<64xf32>
      %14 = vector.multi_reduction <add>, %12, %cst_14 [0] : vector<128x64xf32> to vector<64xf32>
      %15 = vector.shape_cast %14 : vector<64xf32> to vector<1x64xf32>
      %16 = arith.mulf %12, %12 : vector<128x64xf32>
      %cst_15 = arith.constant dense<0.000000e+00> : vector<64xf32>
      %17 = vector.multi_reduction <add>, %16, %cst_15 [0] : vector<128x64xf32> to vector<64xf32>
      %18 = vector.shape_cast %17 : vector<64xf32> to vector<1x64xf32>
      %19 = tpu.iota {dimensions = array<i32: 0>} : vector<8x64xi32>
      %c0_i32_16 = arith.constant 0 : i32
      %20 = vector.broadcast %c0_i32_16 : i32 to vector<8x64xi32>
      %21 = arith.cmpi eq, %19, %20 : vector<8x64xi32>
      %cst_17 = arith.constant 0.000000e+00 : f32
      %22 = vector.shape_cast %15 : vector<1x64xf32> to vector<1x64xf32>
      %23 = vector.broadcast %22 : vector<1x64xf32> to vector<8x64xf32>
      %24 = vector.broadcast %cst_17 : f32 to vector<8x64xf32>
      %25 = arith.select %21, %23, %24 : vector<8x64xi1>, vector<8x64xf32>
      %c1_i32 = arith.constant 1 : i32
      %26 = vector.broadcast %c1_i32 : i32 to vector<8x64xi32>
      %27 = arith.cmpi eq, %19, %26 : vector<8x64xi32>
      %cst_18 = arith.constant 0.000000e+00 : f32
      %28 = vector.shape_cast %18 : vector<1x64xf32> to vector<1x64xf32>
      %29 = vector.broadcast %28 : vector<1x64xf32> to vector<8x64xf32>
      %30 = vector.broadcast %cst_18 : f32 to vector<8x64xf32>
      %31 = arith.select %27, %29, %30 : vector<8x64xi1>, vector<8x64xf32>
      %32 = arith.addf %25, %31 : vector<8x64xf32>
      %c0_19 = arith.constant 0 : index
      %c0_20 = arith.constant 0 : index
      %33 = vector.load %arg6[%c0_19, %c0_20] : memref<8x64xf32, #tpu.memory_space<vmem>>, vector<8x64xf32>
      tpu.vector_store %arg6[%c0_19, %c0_20], %32 {strides = array<i32>} : memref<8x64xf32, #tpu.memory_space<vmem>>, vector<8x64xf32>,
    } else {
    }
    return
  }
  func.func @transform_0(%arg0: i32, %arg1: i32, %arg2: i32) -> (i32, i32) {
    %c0_i32 = arith.constant 0 : i32
    return %arg0, %arg2 : i32, i32
  }
  func.func @transform_1(%arg0: i32, %arg1: i32, %arg2: i32) -> (i32, i32) {
    %c0_i32 = arith.constant 0 : i32
    return %arg2, %arg1 : i32, i32
  }
  func.func @transform_2(%arg0: i32, %arg1: i32, %arg2: i32) -> (i32, i32) {
    %c0_i32 = arith.constant 0 : i32
    return %arg0, %arg1 : i32, i32
  }
  func.func @transform_3(%arg0: i32, %arg1: i32, %arg2: i32) -> (i32, i32) {
    %c0_i32 = arith.constant 0 : i32
    return %arg0, %arg1 : i32, i32
  }
}

</mosaic_0001>

<llo_original>
// kernel: tpu_custom_call.1
$region0: #{tpu_custom_call.1}
  #allocation0 [shape = 'u32[]', space=smem, size = 0x4, offset = 0x4, fixed_abs, tag = 'smem constant byte address 0x4 - core index']
  #allocation1 [shape = 'u32[144,128]{1,0:T(1,128)}', space=vmem, size = 0x12000, scoped, tag = 'internal scratch']
  #allocation2 [shape = 'f32[128,64]{1,0:T(8,128)}', space=vmem, size = 0x10000, scoped, tag = 'scratch operand']
  %s0 = inlined_call_operand.vmem [shape: bf16[128,256], index: 0, kind: input, shape index: {}]
  %s1 = inlined_call_operand.vmem [shape: bf16[256,64], index: 1, kind: input, shape index: {}]
  %s2 = inlined_call_operand.vmem [shape: f32[128,64], index: 2, kind: output, shape index: {0}]
  %s3 = inlined_call_operand.hbm [shape: f32[8,64], index: 3, kind: output, shape index: {1}]
  %4 = xla_tuple %s2, %s3
  %s5 = sld [smem:[#allocation0]]
  $region34: #{tpu_custom_call.1} parent=0
    _
  %s7 = ssub.s32 1, %s5
  %s8 = scalar_select 0, %s7, %s5
  $region1: #{tpu_custom_call.1} parent=0
    #allocation3 [shape = 'u8[4096]{0}', space=vmem, size = 0x1000, scoped, tag = 'output window, operand 1, single buffered']
    #allocation4 [shape = 's32[1]{0}', space=sflag, size = 0x4, scoped, tag = 'scoped memory for tpu_custom_call.1']
    %9 = vsyncpa [#allocation4], 0
    // Predicated region
    $region2: #{tpu_custom_call.1} parent=1 // pred_check
      _
    $region3: #{tpu_custom_call.1} parent=1 // pred_check_branch
      %11 = sbr.rel (0) target = $region5
    $region4: #{tpu_custom_call.1} parent=1 // pred_region
      _
    $region5: #{tpu_custom_call.1} parent=1 // pred_fallthru
      _
    // Predicated region
    $region6: #{tpu_custom_call.1} parent=1 // pred_check
      _
    $region7: #{tpu_custom_call.1} parent=1 // pred_check_branch
      %13 = sbr.rel (0) target = $region9
    $region8: #{tpu_custom_call.1} parent=1 // pred_region
      _
    $region9: #{tpu_custom_call.1} parent=1 // pred_fallthru
      _
    %p15 = scmp.eq.s32.totalorder 0, 0
    // Predicated region
    $region10: #{tpu_custom_call.1} parent=1 // pred_check
      %p16 = pneg %p15
    $region11: #{tpu_custom_call.1} parent=1 // pred_check_branch
      %18 = sbr.rel (%p16) target = $region13
    $region12: #{tpu_custom_call.1} parent=1 // pred_region
      %vm19 = vcmask 523264
      %20 = vst.msk [vmem:[#allocation2] sm:$0xff] %vm19, 0.0
      %21 = vst.msk [vmem:[#allocation2 + $0x8] sm:$0xff] %vm19, 0.0
      %22 = vst.msk [vmem:[#allocation2 + $0x10] sm:$0xff] %vm19, 0.0
      %23 = vst.msk [vmem:[#allocation2 + $0x18] sm:$0xff] %vm19, 0.0
      %24 = vst.msk [vmem:[#allocation2 + $0x20] sm:$0xff] %vm19, 0.0
      %25 = vst.msk [vmem:[#allocation2 + $0x28] sm:$0xff] %vm19, 0.0
      %26 = vst.msk [vmem:[#allocation2 + $0x30] sm:$0xff] %vm19, 0.0
      %27 = vst.msk [vmem:[#allocation2 + $0x38] sm:$0xff] %vm19, 0.0
      %28 = vst.msk [vmem:[#allocation2 + $0x40] sm:$0xff] %vm19, 0.0
      %29 = vst.msk [vmem:[#allocation2 + $0x48] sm:$0xff] %vm19, 0.0
      %30 = vst.msk [vmem:[#allocation2 + $0x50] sm:$0xff] %vm19, 0.0
      %31 = vst.msk [vmem:[#allocation2 + $0x58] sm:$0xff] %vm19, 0.0
      %32 = vst.msk [vmem:[#allocation2 + $0x60] sm:$0xff] %vm19, 0.0
      %33 = vst.msk [vmem:[#allocation2 + $0x68] sm:$0xff] %vm19, 0.0
      %34 = vst.msk [vmem:[#allocation2 + $0x70] sm:$0xff] %vm19, 0.0
      %35 = vst.msk [vmem:[#allocation2 + $0x78] sm:$0xff] %vm19, 0.0
    $region13: #{tpu_custom_call.1} parent=1 // pred_fallthru
      _
    %v36 = vld [vmem:[#allocation2] sm:$0xff]
    %v37 = vld [vmem:[#allocation2 + $0x8] sm:$0xff]
    %v38 = vld [vmem:[#allocation2 + $0x10] sm:$0xff]
    %v39 = vld [vmem:[#allocation2 + $0x18] sm:$0xff]
    %v40 = vld [vmem:[#allocation2 + $0x20] sm:$0xff]
    %v41 = vld [vmem:[#allocation2 + $0x28] sm:$0xff]
    %v42 = vld [vmem:[#allocation2 + $0x30] sm:$0xff]
    %v43 = vld [vmem:[#allocation2 + $0x38] sm:$0xff]
    %v44 = vld [vmem:[#allocation2 + $0x40] sm:$0xff]
    %v45 = vld [vmem:[#allocation2 + $0x48] sm:$0xff]
    %v46 = vld [vmem:[#allocation2 + $0x50] sm:$0xff]
    %v47 = vld [vmem:[#allocation2 + $0x58] sm:$0xff]
    %v48 = vld [vmem:[#allocation2 + $0x60] sm:$0xff]
    %v49 = vld [vmem:[#allocation2 + $0x68] sm:$0xff]
    %v50 = vld [vmem:[#allocation2 + $0x70] sm:$0xff]
    %v51 = vld [vmem:[#allocation2 + $0x78] sm:$0xff]
    %v52 = vld [vmem:[%s0] sm:$0xff]
    %v53 = vld [vmem:[%s0 + $0x8] sm:$0xff]
    %v54 = vld [vmem:[%s0 + $0x10] sm:$0xff]
    %v55 = vld [vmem:[%s0 + $0x18] sm:$0xff]
    %v56 = vld [vmem:[%s0 + $0x20] sm:$0xff]
    %v57 = vld [vmem:[%s0 + $0x28] sm:$0xff]
    %v58 = vld [vmem:[%s0 + $0x30] sm:$0xff]
    %v59 = vld [vmem:[%s0 + $0x38] sm:$0xff]
    %v60 = vld [vmem:[%s0 + $0x40] sm:$0xff]
    %v61 = vld [vmem:[%s0 + $0x48] sm:$0xff]
    %v62 = vld [vmem:[%s0 + $0x50] sm:$0xff]
    %v63 = vld [vmem:[%s0 + $0x58] sm:$0xff]
    %v64 = vld [vmem:[%s0 + $0x60] sm:$0xff]
    %v65 = vld [vmem:[%s0 + $0x68] sm:$0xff]
    %v66 = vld [vmem:[%s0 + $0x70] sm:$0xff]
    %v67 = vld [vmem:[%s0 + $0x78] sm:$0xff]
    %v68 = vld [vmem:[%s1] sm:$0xf]
    %v69 = vld [vmem:[%s1 + $0x4] sm:$0xf]
    %v70 = vld [vmem:[%s1 + $0x8] sm:$0xf]
    %v71 = vld [vmem:[%s1 + $0xc] sm:$0xf]
    %v72 = vld [vmem:[%s1 + $0x10] sm:$0xf]
    %v73 = vld [vmem:[%s1 + $0x14] sm:$0xf]
    %v74 = vld [vmem:[%s1 + $0x18] sm:$0xf]
    %v75 = vld [vmem:[%s1 + $0x1c] sm:$0xf]
    %v76 = vld [vmem:[%s1 + $0x20] sm:$0xf]
    %v77 = vld [vmem:[%s1 + $0x24] sm:$0xf]
    %v78 = vld [vmem:[%s1 + $0x28] sm:$0xf]
    %v79 = vld [vmem:[%s1 + $0x2c] sm:$0xf]
    %v80 = vld [vmem:[%s1 + $0x30] sm:$0xf]
    %v81 = vld [vmem:[%s1 + $0x34] sm:$0xf]
    %v82 = vld [vmem:[%s1 + $0x38] sm:$0xf]
    %v83 = vld [vmem:[%s1 + $0x3c] sm:$0xf]
    %v84 = vld [vmem:[%s1 + $0x40] sm:$0xf]
    %v85 = vld [vmem:[%s1 + $0x44] sm:$0xf]
    %v86 = vld [vmem:[%s1 + $0x48] sm:$0xf]
    %v87 = vld [vmem:[%s1 + $0x4c] sm:$0xf]
    %v88 = vld [vmem:[%s1 + $0x50] sm:$0xf]
    %v89 = vld [vmem:[%s1 + $0x54] sm:$0xf]
    %v90 = vld [vmem:[%s1 + $0x58] sm:$0xf]
    %v91 = vld [vmem:[%s1 + $0x5c] sm:$0xf]
    %v92 = vld [vmem:[%s1 + $0x60] sm:$0xf]
    %v93 = vld [vmem:[%s1 + $0x64] sm:$0xf]
    %v94 = vld [vmem:[%s1 + $0x68] sm:$0xf]
    %v95 = vld [vmem:[%s1 + $0x6c] sm:$0xf]
    %v96 = vld [vmem:[%s1 + $0x70] sm:$0xf]
    %v97 = vld [vmem:[%s1 + $0x74] sm:$0xf]
    %v98 = vld [vmem:[%s1 + $0x78] sm:$0xf]
    %v99 = vld [vmem:[%s1 + $0x7c] sm:$0xf]
    %v116 = vunpack.c.l.b16 %v52
    %v117 = vunpack.c.h.b16 %v52
    %v118 = vunpack.c.l.b16 %v53
    %v119 = vunpack.c.h.b16 %v53
    %v120 = vunpack.c.l.b16 %v54
    %v121 = vunpack.c.h.b16 %v54
    %v122 = vunpack.c.l.b16 %v55
    %v123 = vunpack.c.h.b16 %v55
    %v124 = vunpack.c.l.b16 %v56
    %v125 = vunpack.c.h.b16 %v56
    %v126 = vunpack.c.l.b16 %v57
    %v127 = vunpack.c.h.b16 %v57
    %v128 = vunpack.c.l.b16 %v58
    %v129 = vunpack.c.h.b16 %v58
    %v130 = vunpack.c.l.b16 %v59
    %v131 = vunpack.c.h.b16 %v59
    %v132 = vunpack.c.l.b16 %v60
    %v133 = vunpack.c.h.b16 %v60
    %v134 = vunpack.c.l.b16 %v61
    %v135 = vunpack.c.h.b16 %v61
    %v136 = vunpack.c.l.b16 %v62
    %v137 = vunpack.c.h.b16 %v62
    %v138 = vunpack.c.l.b16 %v63
    %v139 = vunpack.c.h.b16 %v63
    %v140 = vunpack.c.l.b16 %v64
    %v141 = vunpack.c.h.b16 %v64
    %v142 = vunpack.c.l.b16 %v65
    %v143 = vunpack.c.h.b16 %v65
    %v144 = vunpack.c.l.b16 %v66
    %v145 = vunpack.c.h.b16 %v66
    %v146 = vunpack.c.l.b16 %v67
    %v147 = vunpack.c.h.b16 %v67
    %v148 = vpack.c.b16 %v118, %v116
    %v149 = vpack.c.b16 %v119, %v117
    %v150 = vpack.c.b16 %v122, %v120
    %v151 = vpack.c.b16 %v123, %v121
    %v152 = vpack.c.b16 %v126, %v124
    %v153 = vpack.c.b16 %v127, %v125
    %v154 = vpack.c.b16 %v130, %v128
    %v155 = vpack.c.b16 %v131, %v129
    %v156 = vpack.c.b16 %v134, %v132
    %v157 = vpack.c.b16 %v135, %v133
    %v158 = vpack.c.b16 %v138, %v136
    %v159 = vpack.c.b16 %v139, %v137
    %v160 = vpack.c.b16 %v142, %v140
    %v161 = vpack.c.b16 %v143, %v141
    %v162 = vpack.c.b16 %v146, %v144
    %v163 = vpack.c.b16 %v147, %v145
    %v212 = vunpack.c.l.b16 %v68
    %v213 = vunpack.c.l.b16 %v69
    %v214 = vunpack.c.l.b16 %v70
    %v215 = vunpack.c.l.b16 %v71
    %v216 = vunpack.c.l.b16 %v72
    %v217 = vunpack.c.l.b16 %v73
    %v218 = vunpack.c.l.b16 %v74
    %v219 = vunpack.c.l.b16 %v75
    %v220 = vunpack.c.l.b16 %v76
    %v221 = vunpack.c.l.b16 %v77
    %v222 = vunpack.c.l.b16 %v78
    %v223 = vunpack.c.l.b16 %v79
    %v224 = vunpack.c.l.b16 %v80
    %v225 = vunpack.c.l.b16 %v81
    %v226 = vunpack.c.l.b16 %v82
    %v227 = vunpack.c.l.b16 %v83
    %v228 = vunpack.c.l.b16 %v84
    %v229 = vunpack.c.l.b16 %v85
    %v230 = vunpack.c.l.b16 %v86
    %v231 = vunpack.c.l.b16 %v87
    %v232 = vunpack.c.l.b16 %v88
    %v233 = vunpack.c.l.b16 %v89
    %v234 = vunpack.c.l.b16 %v90
    %v235 = vunpack.c.l.b16 %v91
    %v236 = vunpack.c.l.b16 %v92
    %v237 = vunpack.c.l.b16 %v93
    %v238 = vunpack.c.l.b16 %v94
    %v239 = vunpack.c.l.b16 %v95
    %v240 = vunpack.c.l.b16 %v96
    %v241 = vunpack.c.l.b16 %v97
    %v242 = vunpack.c.l.b16 %v98
    %v243 = vunpack.c.l.b16 %v99
    %v244 = vpack.c.b16 %v213, %v212
    %v245 = vpack.c.b16 %v215, %v214
    %v246 = vpack.c.b16 %v217, %v216
    %v247 = vpack.c.b16 %v219, %v218
    %v248 = vpack.c.b16 %v221, %v220
    %v249 = vpack.c.b16 %v223, %v222
    %v250 = vpack.c.b16 %v225, %v224
    %v251 = vpack.c.b16 %v227, %v226
    %v252 = vpack.c.b16 %v229, %v228
    %v253 = vpack.c.b16 %v231, %v230
    %v254 = vpack.c.b16 %v233, %v232
    %v255 = vpack.c.b16 %v235, %v234
    %v256 = vpack.c.b16 %v237, %v236
    %v257 = vpack.c.b16 %v239, %v238
    %v258 = vpack.c.b16 %v241, %v240
    %v259 = vpack.c.b16 %v243, %v242
    %276 = vmatprep.subr.bf16.mxu0 0
    %277 = vmatpush1.bf16.msra.mxu0 %v251
    %278 = vmatprep.subr.bf16.mxu0 0
    %279 = vmatpush1.bf16.msra.mxu0 %v250
    %280 = vmatprep.subr.bf16.mxu0 0
    %281 = vmatpush1.bf16.msra.mxu0 %v249
    %282 = vmatprep.subr.bf16.mxu0 0
    %283 = vmatpush1.bf16.msra.mxu0 %v248
    %284 = vmatprep.subr.bf16.mxu0 0
    %285 = vmatpush1.bf16.msra.mxu0 %v247
    %286 = vmatprep.subr.bf16.mxu0 0
    %287 = vmatpush1.bf16.msra.mxu0 %v246
    %288 = vmatprep.subr.bf16.mxu0 0
    %289 = vmatpush1.bf16.msra.mxu0 %v245
    %290 = vmatprep.subr.bf16.mxu0 0
    %291 = vmatpush1.bf16.msra.mxu0 %v244
    %292 = vmatprep.subr.bf16.mxu0 0
    %293 = vmatpush2.bf16.msra.mxu0 %v259
    %294 = vmatprep.subr.bf16.mxu0 0
    %295 = vmatpush2.bf16.msra.mxu0 %v258
    %296 = vmatprep.subr.bf16.mxu0 0
    %297 = vmatpush2.bf16.msra.mxu0 %v257
    %298 = vmatprep.subr.bf16.mxu0 0
    %299 = vmatpush2.bf16.msra.mxu0 %v256
    %300 = vmatprep.subr.bf16.mxu0 0
    %301 = vmatpush2.bf16.msra.mxu0 %v255
    %302 = vmatprep.subr.bf16.mxu0 0
    %303 = vmatpush2.bf16.msra.mxu0 %v254
    %304 = vmatprep.subr.bf16.mxu0 0
    %305 = vmatpush2.bf16.msra.mxu0 %v253
    %306 = vmatprep.subr.bf16.mxu0 0
    %307 = vmatpush2.bf16.msra.mxu0 %v252
    %308 = vmatprep.mubr.bf16.mxu0 %v149
    %309 = vmatmul.mubr.bf16.gmra.mxu0 %v148
    %v310 = vpop.f32.mrf.mxu0
    %v311 = vadd.f32 0.0, %v310
    %v312 = vpop.f32.mrf.mxu0
    %v313 = vpop.f32.mrf.mxu0
    %v314 = vadd.f32 0.0, %v313
    %v315 = vpop.f32.mrf.mxu0
    %316 = vmatprep.mubr.bf16.mxu0 %v151
    %317 = vmatmul.mubr.bf16.gmra.mxu0 %v150
    %v318 = vpop.f32.mrf.mxu0
    %v319 = vadd.f32 0.0, %v318
    %v320 = vpop.f32.mrf.mxu0
    %v321 = vpop.f32.mrf.mxu0
    %v322 = vadd.f32 0.0, %v321
    %v323 = vpop.f32.mrf.mxu0
    %324 = vmatprep.mubr.bf16.mxu0 %v153
    %325 = vmatmul.mubr.bf16.gmra.mxu0 %v152
    %v326 = vpop.f32.mrf.mxu0
    %v327 = vadd.f32 0.0, %v326
    %v328 = vpop.f32.mrf.mxu0
    %v329 = vpop.f32.mrf.mxu0
    %v330 = vadd.f32 0.0, %v329
    %v331 = vpop.f32.mrf.mxu0
    %332 = vmatprep.mubr.bf16.mxu0 %v155
    %333 = vmatmul.mubr.bf16.gmra.mxu0 %v154
    %v334 = vpop.f32.mrf.mxu0
    %v335 = vadd.f32 0.0, %v334
    %v336 = vpop.f32.mrf.mxu0
    %v337 = vpop.f32.mrf.mxu0
    %v338 = vadd.f32 0.0, %v337
    %v339 = vpop.f32.mrf.mxu0
    %340 = vmatprep.mubr.bf16.mxu0 %v157
    %341 = vmatmul.mubr.bf16.gmra.mxu0 %v156
    %v342 = vpop.f32.mrf.mxu0
    %v343 = vadd.f32 0.0, %v342
    %v344 = vpop.f32.mrf.mxu0
    %v345 = vpop.f32.mrf.mxu0
    %v346 = vadd.f32 0.0, %v345
    %v347 = vpop.f32.mrf.mxu0
    %348 = vmatprep.mubr.bf16.mxu0 %v159
    %349 = vmatmul.mubr.bf16.gmra.mxu0 %v158
    %v350 = vpop.f32.mrf.mxu0
    %v351 = vadd.f32 0.0, %v350
    %v352 = vpop.f32.mrf.mxu0
    %v353 = vpop.f32.mrf.mxu0
    %v354 = vadd.f32 0.0, %v353
    %v355 = vpop.f32.mrf.mxu0
    %356 = vmatprep.mubr.bf16.mxu0 %v161
    %357 = vmatmul.mubr.bf16.gmra.mxu0 %v160
    %v358 = vpop.f32.mrf.mxu0
    %v359 = vadd.f32 0.0, %v358
    %v360 = vpop.f32.mrf.mxu0
    %v361 = vpop.f32.mrf.mxu0
    %v362 = vadd.f32 0.0, %v361
    %v363 = vpop.f32.mrf.mxu0
    %364 = vmatprep.mubr.bf16.mxu0 %v163
    %365 = vmatmul.mubr.bf16.gmra.mxu0 %v162
    %v366 = vpop.f32.mrf.mxu0
    %v367 = vadd.f32 0.0, %v366
    %v368 = vpop.f32.mrf.mxu0
    %v369 = vpop.f32.mrf.mxu0
    %v370 = vadd.f32 0.0, %v369
    %v371 = vpop.f32.mrf.mxu0
    %372 = vdwg.mxu0
    %v373 = vadd.f32 %v36, %v311
    %v374 = vadd.f32 %v37, %v314
    %v375 = vadd.f32 %v38, %v319
    %v376 = vadd.f32 %v39, %v322
    %v377 = vadd.f32 %v40, %v327
    %v378 = vadd.f32 %v41, %v330
    %v379 = vadd.f32 %v42, %v335
    %v380 = vadd.f32 %v43, %v338
    %v381 = vadd.f32 %v44, %v343
    %v382 = vadd.f32 %v45, %v346
    %v383 = vadd.f32 %v46, %v351
    %v384 = vadd.f32 %v47, %v354
    %v385 = vadd.f32 %v48, %v359
    %v386 = vadd.f32 %v49, %v362
    %v387 = vadd.f32 %v50, %v367
    %v388 = vadd.f32 %v51, %v370
    %vm389 = vcmask 523264
    %390 = vst.msk [vmem:[#allocation2] sm:$0xff] %vm389, %v373
    %391 = vst.msk [vmem:[#allocation2 + $0x8] sm:$0xff] %vm389, %v374
    %392 = vst.msk [vmem:[#allocation2 + $0x10] sm:$0xff] %vm389, %v375
    %393 = vst.msk [vmem:[#allocation2 + $0x18] sm:$0xff] %vm389, %v376
    %394 = vst.msk [vmem:[#allocation2 + $0x20] sm:$0xff] %vm389, %v377
    %395 = vst.msk [vmem:[#allocation2 + $0x28] sm:$0xff] %vm389, %v378
    %396 = vst.msk [vmem:[#allocation2 + $0x30] sm:$0xff] %vm389, %v379
    %397 = vst.msk [vmem:[#allocation2 + $0x38] sm:$0xff] %vm389, %v380
    %398 = vst.msk [vmem:[#allocation2 + $0x40] sm:$0xff] %vm389, %v381
    %399 = vst.msk [vmem:[#allocation2 + $0x48] sm:$0xff] %vm389, %v382
    %400 = vst.msk [vmem:[#allocation2 + $0x50] sm:$0xff] %vm389, %v383
    %401 = vst.msk [vmem:[#allocation2 + $0x58] sm:$0xff] %vm389, %v384
    %402 = vst.msk [vmem:[#allocation2 + $0x60] sm:$0xff] %vm389, %v385
    %403 = vst.msk [vmem:[#allocation2 + $0x68] sm:$0xff] %vm389, %v386
    %404 = vst.msk [vmem:[#allocation2 + $0x70] sm:$0xff] %vm389, %v387
    %405 = vst.msk [vmem:[#allocation2 + $0x78] sm:$0xff] %vm389, %v388
    // Predicated region
    $region14: #{tpu_custom_call.1} parent=1 // pred_check
      %p406 = pneg %p15
    $region15: #{tpu_custom_call.1} parent=1 // pred_check_branch
      %408 = sbr.rel (%p406) target = $region17
    $region16: #{tpu_custom_call.1} parent=1 // pred_region
      %v409 = vld [vmem:[#allocation2] sm:$0xff]
      %v410 = vld [vmem:[#allocation2 + $0x8] sm:$0xff]
      %v411 = vld [vmem:[#allocation2 + $0x10] sm:$0xff]
      %v412 = vld [vmem:[#allocation2 + $0x18] sm:$0xff]
      %v413 = vld [vmem:[#allocation2 + $0x20] sm:$0xff]
      %v414 = vld [vmem:[#allocation2 + $0x28] sm:$0xff]
      %v415 = vld [vmem:[#allocation2 + $0x30] sm:$0xff]
      %v416 = vld [vmem:[#allocation2 + $0x38] sm:$0xff]
      %v417 = vld [vmem:[#allocation2 + $0x40] sm:$0xff]
      %v418 = vld [vmem:[#allocation2 + $0x48] sm:$0xff]
      %v419 = vld [vmem:[#allocation2 + $0x50] sm:$0xff]
      %v420 = vld [vmem:[#allocation2 + $0x58] sm:$0xff]
      %v421 = vld [vmem:[#allocation2 + $0x60] sm:$0xff]
      %v422 = vld [vmem:[#allocation2 + $0x68] sm:$0xff]
      %v423 = vld [vmem:[#allocation2 + $0x70] sm:$0xff]
      %v424 = vld [vmem:[#allocation2 + $0x78] sm:$0xff]
      %425 = vst.msk [vmem:[%s2] sm:$0xff] %vm389, %v409
      %426 = vst.msk [vmem:[%s2 + $0x8] sm:$0xff] %vm389, %v410
      %427 = vst.msk [vmem:[%s2 + $0x10] sm:$0xff] %vm389, %v411
      %428 = vst.msk [vmem:[%s2 + $0x18] sm:$0xff] %vm389, %v412
      %429 = vst.msk [vmem:[%s2 + $0x20] sm:$0xff] %vm389, %v413
      %430 = vst.msk [vmem:[%s2 + $0x28] sm:$0xff] %vm389, %v414
      %431 = vst.msk [vmem:[%s2 + $0x30] sm:$0xff] %vm389, %v415
      %432 = vst.msk [vmem:[%s2 + $0x38] sm:$0xff] %vm389, %v416
      %433 = vst.msk [vmem:[%s2 + $0x40] sm:$0xff] %vm389, %v417
      %434 = vst.msk [vmem:[%s2 + $0x48] sm:$0xff] %vm389, %v418
      %435 = vst.msk [vmem:[%s2 + $0x50] sm:$0xff] %vm389, %v419
      %436 = vst.msk [vmem:[%s2 + $0x58] sm:$0xff] %vm389, %v420
      %437 = vst.msk [vmem:[%s2 + $0x60] sm:$0xff] %vm389, %v421
      %438 = vst.msk [vmem:[%s2 + $0x68] sm:$0xff] %vm389, %v422
      %439 = vst.msk [vmem:[%s2 + $0x70] sm:$0xff] %vm389, %v423
      %440 = vst.msk [vmem:[%s2 + $0x78] sm:$0xff] %vm389, %v424
      %v441 = vsel %vm389, %v409, 0.0
      %v442 = vsel %vm389, %v410, 0.0
      %v443 = vadd.f32 %v441, %v442
      %v444 = vsel %vm389, %v411, 0.0
      %v445 = vadd.f32 %v443, %v444
      %v446 = vsel %vm389, %v412, 0.0
      %v447 = vadd.f32 %v445, %v446
      %v448 = vsel %vm389, %v413, 0.0
      %v449 = vadd.f32 %v447, %v448
      %v450 = vsel %vm389, %v414, 0.0
      %v451 = vadd.f32 %v449, %v450
      %v452 = vsel %vm389, %v415, 0.0
      %v453 = vadd.f32 %v451, %v452
      %v454 = vsel %vm389, %v416, 0.0
      %v455 = vadd.f32 %v453, %v454
      %v456 = vsel %vm389, %v417, 0.0
      %v457 = vadd.f32 %v455, %v456
      %v458 = vsel %vm389, %v418, 0.0
      %v459 = vadd.f32 %v457, %v458
      %v460 = vsel %vm389, %v419, 0.0
      %v461 = vadd.f32 %v459, %v460
      %v462 = vsel %vm389, %v420, 0.0
      %v463 = vadd.f32 %v461, %v462
      %v464 = vsel %vm389, %v421, 0.0
      %v465 = vadd.f32 %v463, %v464
      %v466 = vsel %vm389, %v422, 0.0
      %v467 = vadd.f32 %v465, %v466
      %v468 = vsel %vm389, %v423, 0.0
      %v469 = vadd.f32 %v467, %v468
      %v470 = vsel %vm389, %v424, 0.0
      %v471 = vadd.f32 %v469, %v470
      %v472 = vrot.slane %v471, 4
      %v473 = vadd.f32 %v471, %v472
      %v474 = vrot.slane %v473, 2
      %v475 = vadd.f32 %v473, %v474
      %v476 = vrot.slane %v475, 1
      %v477 = vadd.f32 %v475, %v476
      %v478 = vmul.f32 %v409, %v409
      %v479 = vmul.f32 %v410, %v410
      %v480 = vmul.f32 %v411, %v411
      %v481 = vmul.f32 %v412, %v412
      %v482 = vmul.f32 %v413, %v413
      %v483 = vmul.f32 %v414, %v414
      %v484 = vmul.f32 %v415, %v415
      %v485 = vmul.f32 %v416, %v416
      %v486 = vmul.f32 %v417, %v417
      %v487 = vmul.f32 %v418, %v418
      %v488 = vmul.f32 %v419, %v419
      %v489 = vmul.f32 %v420, %v420
      %v490 = vmul.f32 %v421, %v421
      %v491 = vmul.f32 %v422, %v422
      %v492 = vmul.f32 %v423, %v423
      %v493 = vmul.f32 %v424, %v424
      %v494 = vsel %vm389, %v478, 0.0
      %v495 = vsel %vm389, %v479, 0.0
      %v496 = vadd.f32 %v494, %v495
      %v497 = vsel %vm389, %v480, 0.0
      %v498 = vadd.f32 %v496, %v497
      %v499 = vsel %vm389, %v481, 0.0
      %v500 = vadd.f32 %v498, %v499
      %v501 = vsel %vm389, %v482, 0.0
      %v502 = vadd.f32 %v500, %v501
      %v503 = vsel %vm389, %v483, 0.0
      %v504 = vadd.f32 %v502, %v503
      %v505 = vsel %vm389, %v484, 0.0
      %v506 = vadd.f32 %v504, %v505
      %v507 = vsel %vm389, %v485, 0.0
      %v508 = vadd.f32 %v506, %v507
      %v509 = vsel %vm389, %v486, 0.0
      %v510 = vadd.f32 %v508, %v509
      %v511 = vsel %vm389, %v487, 0.0
      %v512 = vadd.f32 %v510, %v511
      %v513 = vsel %vm389, %v488, 0.0
      %v514 = vadd.f32 %v512, %v513
      %v515 = vsel %vm389, %v489, 0.0
      %v516 = vadd.f32 %v514, %v515
      %v517 = vsel %vm389, %v490, 0.0
      %v518 = vadd.f32 %v516, %v517
      %v519 = vsel %vm389, %v491, 0.0
      %v520 = vadd.f32 %v518, %v519
      %v521 = vsel %vm389, %v492, 0.0
      %v522 = vadd.f32 %v520, %v521
      %v523 = vsel %vm389, %v493, 0.0
      %v524 = vadd.f32 %v522, %v523
      %v525 = vrot.slane %v524, 4
      %v526 = vadd.f32 %v524, %v525
      %v527 = vrot.slane %v526, 2
      %v528 = vadd.f32 %v526, %v527
      %v529 = vrot.slane %v528, 1
      %v530 = vadd.f32 %v528, %v529
      %v531 = vlaneseq
      %v532 = vshrl.u32 %v531, 7
      %vm533 = vcmp.eq.s32.totalorder %v532, 0
      %v534 = vsel %vm533, %v477, 0.0
      %vm535 = vcmp.eq.s32.totalorder %v532, 1
      %v536 = vsel %vm535, %v530, 0.0
      %v537 = vadd.f32 %v534, %v536
      %538 = vst.msk [vmem:[#allocation3] sm:$0xff] %vm389, %v537
    $region17: #{tpu_custom_call.1} parent=1 // pred_fallthru
      _
    // Predicated region
    $region18: #{tpu_custom_call.1} parent=1 // pred_check
      _
    $region19: #{tpu_custom_call.1} parent=1 // pred_check_branch
      %540 = sbr.rel (0) target = $region21
    $region20: #{tpu_custom_call.1} parent=1 // pred_region
      _
    $region21: #{tpu_custom_call.1} parent=1 // pred_fallthru
      _
    // Predicated region
    $region22: #{tpu_custom_call.1} parent=1 // pred_check
      _
    $region23: #{tpu_custom_call.1} parent=1 // pred_check_branch
      %542 = sbr.rel (0) target = $region25
    $region24: #{tpu_custom_call.1} parent=1 // pred_region
      %s544 = ssub.s32 128, 128
      %545 = vsyncadd [#allocation4], %s544
      %s547 = sshll.u32 [#allocation3], 4
      %s548 = int_to_ptr.vmem [resolvable:$true] %s547
      %550 = dma.vmem_to_hbm [thread:$0]  %s548, 128, %s3, [#allocation4]
    $region25: #{tpu_custom_call.1} parent=1 // pred_fallthru
      _
    // Predicated region
    $region26: #{tpu_custom_call.1} parent=1 // pred_check
      _
    $region27: #{tpu_custom_call.1} parent=1 // pred_check_branch
      %552 = sbr.rel (0) target = $region29
    $region28: #{tpu_custom_call.1} parent=1 // pred_region
      _
    $region29: #{tpu_custom_call.1} parent=1 // pred_fallthru
      _
    // Predicated region
    $region30: #{tpu_custom_call.1} parent=1 // pred_check
      _
    $region31: #{tpu_custom_call.1} parent=1 // pred_check_branch
      %554 = sbr.rel (0) target = $region33
    $region32: #{tpu_custom_call.1} parent=1 // pred_region
      %555 = dma.done [#allocation4], 128
    $region33: #{tpu_custom_call.1} parent=1 // pred_fallthru
      _
    %556 = vsyncpa [#allocation4], 1

</llo_original>
